<compile_context>
chip_gen: v5e
topology: v5e:2x2
jax: 0.10.0
libtpu: 0.0.40
codegen_flags: <defaults>
</compile_context>

<pallas_src>
import functools

import jax
import jax.numpy as jnp
from jax.experimental import pallas as pl
from jax.experimental.pallas import tpu as pltpu

EPS = 1e-5   # nn.BatchNorm2d default eps
LANE = 128


def _round_up(x, m):
    return (x + m - 1) // m * m


def _choose_tm(m):
    # Biggest M tile that still leaves >= 2 grid steps (dual-TC sharding).
    for tm in (512, 256, 128):
        if m >= 2 * tm:
            return tm
    return 128


def _choose_tn(cp):
    # cp is already a multiple of 128.
    for tn in (512, 256, 128):
        if cp % tn == 0:
            return tn
    return cp


def _make_kernel(is_act, act):
    """Kernel factory; activation choice is static (closed over at trace)."""

    def kernel(p_ref, w_ref, b_ref, o_ref):
        # p_ref : (tm, Kp)  bf16 im2col tile
        # w_ref : (Kp, tn)  bf16 weights (BN scale pre-folded)
        # b_ref : (1,  tn)  f32  BN bias
        acc = jnp.dot(p_ref[...], w_ref[...],
                      preferred_element_type=jnp.float32)
        y = acc + b_ref[...]
        if is_act:
            if act == "relu":
                y = jnp.maximum(y, 0.0)
            elif act == "hardswish":
                # x * relu6(x + 3) / 6
                y = y * jnp.clip(y + 3.0, 0.0, 6.0) * (1.0 / 6.0)
            else:
                raise NotImplementedError(f"act: {act} is not implemented!")
        o_ref[...] = y.astype(o_ref.dtype)

    return kernel


def conv_bn_layer(x_nchw, weight, gamma, beta, running_mean, running_var,
                  *, stride=1, padding=0, is_act=True, act="relu"):
    """Fused Conv2d(bias=False) + BatchNorm2d(eval) + optional activation."""
    N, Cin, H, W = x_nchw.shape
    Cout, Cin_w, Kh, Kw = weight.shape
    assert Cin_w == Cin

    # ---- glue: NCHW -> NHWC, pad, im2col in bf16 (plain JAX, jit-fused) ----
    x = jnp.transpose(x_nchw, (0, 2, 3, 1)).astype(jnp.bfloat16)  # NHWC
    xp = jnp.pad(x, ((0, 0), (padding, padding), (padding, padding), (0, 0)))
    Ho = (H + 2 * padding - Kh) // stride + 1
    Wo = (W + 2 * padding - Kw) // stride + 1

    cols = []
    for kh in range(Kh):
        for kw in range(Kw):
            cols.append(
                xp[:, kh:kh + Ho * stride:stride, kw:kw + Wo * stride:stride, :])
    # K-dim order (kh, kw, cin)
    patches = jnp.concatenate(cols, axis=-1).reshape(N * Ho * Wo, Kh * Kw * Cin)

    K = Kh * Kw * Cin
    M = N * Ho * Wo
    Kp = _round_up(K, LANE)        # lane-dense contraction dim
    Cp = _round_up(Cout, LANE)     # lane-dense output dim
    tm = _choose_tm(M)
    tn = _choose_tn(Cp)
    Mp = _round_up(M, tm)

    patches = jnp.pad(patches, ((0, Mp - M), (0, Kp - K)))        # bf16

    # Fold BN (eval) into the conv:  y = X @ (W * scale) + bias
    scale = gamma.astype(jnp.float32) * jax.lax.rsqrt(
        running_var.astype(jnp.float32) + EPS)
    bias = beta.astype(jnp.float32) - running_mean.astype(jnp.float32) * scale

    # weight (Cout, Cin, Kh, Kw) -> (Kh, Kw, Cin, Cout) -> (K, Cout); scale
    # folded per output channel while still f32, then padded + cast to bf16.
    w2d = jnp.transpose(weight, (2, 3, 1, 0)).reshape(K, Cout)
    w2d = w2d.astype(jnp.float32) * scale[None, :]
    w2d = jnp.pad(w2d, ((0, Kp - K), (0, Cp - Cout))).astype(jnp.bfloat16)

    bias_p = jnp.pad(bias, (0, Cp - Cout)).reshape(1, Cp)          # (1, Cp) f32

    # Rough double-buffered VMEM budget + headroom, capped at 32 MiB so it is
    # valid on every generation (v7x has only 64 MiB physical per TC).
    vmem_bytes = 2 * (tm * Kp * 2 + Kp * tn * 2 + tn * 4 + tm * tn * 4)
    vmem_limit = int(min(max(2 * vmem_bytes, 8 << 20), 32 << 20))

    kernel = _make_kernel(is_act, act)

    # ---- hot path: fused matmul + BN bias + activation in Pallas ----------
    # Grid: (M tiles, Cout tiles); Cout innermost so the (larger) im2col tile
    # is DMA'd only once per M step.
    out2d = pl.pallas_call(
        kernel,
        out_shape=jax.ShapeDtypeStruct((Mp, Cp), jnp.float32),
        grid_spec=pltpu.PrefetchScalarGridSpec(
            num_scalar_prefetch=0,
            grid=(Mp // tm, Cp // tn),
            in_specs=[
                pl.BlockSpec((tm, Kp), lambda i, j: (i, 0)),
                pl.BlockSpec((Kp, tn), lambda i, j: (0, j)),
                pl.BlockSpec((1, tn), lambda i, j: (0, j)),
            ],
            out_specs=pl.BlockSpec((tm, tn), lambda i, j: (i, j)),
        ),
        compiler_params=pltpu.CompilerParams(
            dimension_semantics=("parallel", "parallel"),
            vmem_limit_bytes=vmem_limit),
    )(patches, w2d, bias_p)

    out = out2d[:M, :Cout].reshape(N, Ho, Wo, Cout)
    return jnp.transpose(out, (0, 3, 1, 2))  # back to NCHW


def _reference(x_nchw, weight, gamma, beta, running_mean, running_var,
               *, stride=1, padding=0, is_act=True, act="relu"):
    y = jax.lax.conv_general_dilated(
        x_nchw.astype(jnp.float32), weight.astype(jnp.float32),
        window_strides=(stride, stride),
        padding=((padding, padding), (padding, padding)),
        dimension_numbers=("NCHW", "OIHW", "NCHW"))
    inv_std = jax.lax.rsqrt(running_var + EPS)
    y = (y - running_mean[None, :, None, None]) * inv_std[None, :, None, None] \
        * gamma[None, :, None, None] + beta[None, :, None, None]
    if is_act:
        if act == "relu":
            y = jnp.maximum(y, 0.0)
        elif act == "hardswish":
            y = y * jnp.clip(y + 3.0, 0.0, 6.0) * (1.0 / 6.0)
    return y


if __name__ == "__main__":
    # ConvBnLayer(in_channels=4, out_channels=8, kernel_size=3, padding=1)
    N, Cin, H, W = 2, 4, 16, 16
    Cout, Kh, Kw = 8, 3, 3
    stride, padding = 1, 1

    key = jax.random.PRNGKey(0)
    kx, kw_, kg, kb, km, kv = jax.random.split(key, 6)

    x = jax.random.normal(kx, (N, Cin, H, W), dtype=jnp.float32)
    weight = jax.random.normal(kw_, (Cout, Cin, Kh, Kw), dtype=jnp.float32) * 0.1
    gamma = 1.0 + 0.1 * jax.random.normal(kg, (Cout,), dtype=jnp.float32)
    beta = 0.1 * jax.random.normal(kb, (Cout,), dtype=jnp.float32)
    running_mean = 0.1 * jax.random.normal(km, (Cout,), dtype=jnp.float32)
    running_var = 1.0 + 0.1 * jax.random.uniform(kv, (Cout,), dtype=jnp.float32)

    fused = jax.jit(functools.partial(
        conv_bn_layer, stride=stride, padding=padding))

    # --- ReLU path (module defaults) ---------------------------------------
    out = jax.block_until_ready(
        fused(x, weight, gamma, beta, running_mean, running_var))
    ref = _reference(x, weight, gamma, beta, running_mean, running_var,
                     stride=stride, padding=padding)
    assert out.shape == (N, Cout, H, W), out.shape
    # bf16 MXU inputs (f32 accumulation) -> loosened tolerance vs pure-f32 ref
    assert jnp.allclose(out, ref, atol=2e-2, rtol=2e-2), \
        float(jnp.max(jnp.abs(out - ref)))

    # --- HSwish path (act='hardswish') -------------------------------------
    fused_hs = jax.jit(functools.partial(
        conv_bn_layer, stride=stride, padding=padding, act="hardswish"))
    out_hs = jax.block_until_ready(
        fused_hs(x, weight, gamma, beta, running_mean, running_var))
    ref_hs = _reference(x, weight, gamma, beta, running_mean, running_var,
                        stride=stride, padding=padding, act="hardswish")
    assert jnp.allclose(out_hs, ref_hs, atol=2e-2, rtol=2e-2), \
        float(jnp.max(jnp.abs(out_hs - ref_hs)))

    print("KERNEL_OK")
</pallas_src>

<mosaic_0001>
module attributes {stable_mosaic.version = 11 : i64} {
  func.func @kernel(%arg0: i32, %arg1: i32, %arg2: memref<256x128xbf16, #tpu.memory_space<vmem>>, %arg3: memref<128x128xbf16, #tpu.memory_space<vmem>>, %arg4: memref<1x128xf32, #tpu.memory_space<vmem>>, %arg5: memref<256x128xf32, #tpu.memory_space<vmem>>) attributes {dimension_semantics = [#tpu.dimension_semantics<parallel>, #tpu.dimension_semantics<parallel>], iteration_bounds = array<i64: 2, 1>, scalar_prefetch = 0 : i64, scratch_operands = 0 : i64, tpu.core_type = #tpu.core_type<tc>, window_params = [{transform_indices = @transform_0, window_bounds = array<i64: 256, 128>}, {transform_indices = @transform_1, window_bounds = array<i64: 128, 128>}, {transform_indices = @transform_2, window_bounds = array<i64: 1, 128>}, {transform_indices = @transform_3, window_bounds = array<i64: 256, 128>}]} {
    %c0 = arith.constant 0 : index
    %c0_0 = arith.constant 0 : index
    %0 = vector.load %arg2[%c0, %c0_0] : memref<256x128xbf16, #tpu.memory_space<vmem>>, vector<256x128xbf16>
    %c0_1 = arith.constant 0 : index
    %c0_2 = arith.constant 0 : index
    %1 = vector.load %arg3[%c0_1, %c0_2] : memref<128x128xbf16, #tpu.memory_space<vmem>>, vector<128x128xbf16>
    %cst = arith.constant dense<0.000000e+00> : vector<256x128xf32>
    %2 = tpu.matmul %0, %1, %cst {dimension_numbers = #tpu.dot_dimension_numbers<[1], [0], [0], [1], [0, 0, 1, 1], [], []>} : vector<256x128xbf16>, vector<128x128xbf16>, vector<256x128xf32> -> vector<256x128xf32>
    %c0_3 = arith.constant 0 : index
    %c0_4 = arith.constant 0 : index
    %3 = vector.load %arg4[%c0_3, %c0_4] : memref<1x128xf32, #tpu.memory_space<vmem>>, vector<1x128xf32>
    %4 = vector.broadcast %3 : vector<1x128xf32> to vector<256x128xf32>
    %5 = arith.addf %2, %4 : vector<256x128xf32>
    %cst_5 = arith.constant 0.000000e+00 : f32
    %6 = vector.broadcast %cst_5 : f32 to vector<256x128xf32>
    %7 = arith.maximumf %5, %6 : vector<256x128xf32>
    %c0_6 = arith.constant 0 : index
    %c0_7 = arith.constant 0 : index
    %8 = vector.load %arg5[%c0_6, %c0_7] : memref<256x128xf32, #tpu.memory_space<vmem>>, vector<256x128xf32>
    tpu.vector_store %arg5[%c0_6, %c0_7], %7 {strides = array<i32>} : memref<256x128xf32, #tpu.memory_space<vmem>>, vector<256x128xf32>,
    return
  }
  func.func @transform_0(%arg0: i32, %arg1: i32) -> (i32, i32) {
    %c0_i32 = arith.constant 0 : i32
    %c0_i32_0 = arith.constant 0 : i32
    return %arg0, %c0_i32 : i32, i32
  }
  func.func @transform_1(%arg0: i32, %arg1: i32) -> (i32, i32) {
    %c0_i32 = arith.constant 0 : i32
    %c0_i32_0 = arith.constant 0 : i32
    return %c0_i32, %arg1 : i32, i32
  }
  func.func @transform_2(%arg0: i32, %arg1: i32) -> (i32, i32) {
    %c0_i32 = arith.constant 0 : i32
    %c0_i32_0 = arith.constant 0 : i32
    return %c0_i32, %arg1 : i32, i32
  }
  func.func @transform_3(%arg0: i32, %arg1: i32) -> (i32, i32) {
    %c0_i32 = arith.constant 0 : i32
    return %arg0, %arg1 : i32, i32
  }
}

</mosaic_0001>

<llo_original>
// kernel: conv_bn_layer.1
$region0: #{conv_bn_layer.1}
  #allocation0 [shape = 'u32[]', space=smem, size = 0x4, offset = 0x4, fixed_abs, tag = 'smem constant byte address 0x4 - core index']
  #allocation1 [shape = 'u32[72,128]{1,0:T(1,128)}', space=vmem, size = 0x9000, scoped, tag = 'internal scratch']
  %s0 = inlined_call_operand.vmem [shape: bf16[512,128], index: 0, kind: input, shape index: {}]
  %s1 = inlined_call_operand.vmem [shape: bf16[128,128], index: 1, kind: input, shape index: {}]
  %s2 = inlined_call_operand.vmem [shape: f32[1,128], index: 2, kind: input, shape index: {}]
  %s3 = inlined_call_operand.vmem [shape: f32[512,128], index: 3, kind: output, shape index: {}]
  %s4 = sld [smem:[#allocation0]]
  $region45: #{conv_bn_layer.1} parent=0
    _
  %s6 = ssub.s32 1, %s4
  %s7 = scalar_select 0, %s6, %s4
  loop: start=0, step=1, limit=4
  $region2: #{conv_bn_layer.1} parent=0 // loop_pre_header
    _
  $region3: #{conv_bn_layer.1} parent=0 // loop_header
    %s9 = sphi 0, %s13
    %p10 = scmp.ge.s32.totalorder %s9, 4
    %s16 = sphi 0, %s28
    %s17 = sphi 0, %s24
    %s18 = sphi 0, %s16
    %s19 = sphi 0, %s17
    %s20 = sphi 0, %s18
    %s21 = sphi 0, %s19
    %s31 = sphi 0, %s33
    %s34 = sphi 0, %s31
    %s35 = sphi 0, %s34
    %s51 = sphi 0, %s35
    %s57 = sphi 0, %s59
    %s60 = sphi 0, %s57
    %s61 = sphi 0, %s60
    %s77 = sphi 0, %s61
    %s83 = sphi 0, %s85
    %s86 = sphi 0, %s83
    %s87 = sphi 0, %s86
    %s103 = sphi 0, %s87
    %s111 = sphi 0, %s113
    %s114 = sphi 0, %s111
    %s115 = sphi 0, %s114
    %s131 = sphi 0, %s115
  $region4: #{conv_bn_layer.1} parent=0 // loop_header_branch
    %12 = sbr.rel (%p10) target = $region8
  $region5: #{conv_bn_layer.1} parent=0 // loop_body
    %s14 = ssub.s32 %s9, 1
    %s15 = ssub.s32 %s9, 2
    %s22 = sadd.s32 1, %s17
    %p23 = scmp.ge.s32.totalorder %s22, 1
    %s24 = scalar_select %p23, 0, %s22
    %s25 = sadd.s32 1, %s16
    %s26 = scalar_select %p23, %s25, %s16
    %p27 = scmp.ge.s32.totalorder %s26, 2
    %s28 = scalar_select %p27, 0, %s26
    %s29 = ssub.s32 %s16, %s28
    %p30 = scmp.eq.s32.totalorder %s29, 0
    %s32 = sadd.s32 %s31, 1
    %s33 = scalar_select %p30, %s31, %s32
    %p36 = pneg %p30
    %p37 = scmp.eq.s32.totalorder %s9, 1
    %p38 = por %p36, %p37
    %p39 = scmp.ne.s32.totalorder %s31, %s34
    %p40 = scmp.eq.s32.totalorder %s9, 0
    %p41 = por %p39, %p40
    %p42 = scmp.ne.s32.totalorder %s31, %s34
    %p43 = scmp.eq.s32.totalorder %s14, 1
    %p44 = por %p42, %p43
    %p45 = scmp.ne.s32.totalorder %s34, %s35
    %p46 = scmp.eq.s32.totalorder %s14, 0
    %p47 = por %p45, %p46
    %p48 = scmp.ne.s32.totalorder %s34, %s35
    %p49 = scmp.eq.s32.totalorder %s15, 1
    %p50 = por %p48, %p49
    %p52 = scmp.ne.s32.totalorder %s35, %s51
    %p53 = scmp.eq.s32.totalorder %s15, 0
    %p54 = por %p52, %p53
    %s55 = ssub.s32 %s17, %s24
    %p56 = scmp.eq.s32.totalorder %s55, 0
    %s58 = sadd.s32 %s57, 1
    %s59 = scalar_select %p56, %s57, %s58
    %p62 = pneg %p56
    %p63 = scmp.eq.s32.totalorder %s9, 1
    %p64 = por %p62, %p63
    %p65 = scmp.ne.s32.totalorder %s57, %s60
    %p66 = scmp.eq.s32.totalorder %s9, 0
    %p67 = por %p65, %p66
    %p68 = scmp.ne.s32.totalorder %s57, %s60
    %p69 = scmp.eq.s32.totalorder %s14, 1
    %p70 = por %p68, %p69
    %p71 = scmp.ne.s32.totalorder %s60, %s61
    %p72 = scmp.eq.s32.totalorder %s14, 0
    %p73 = por %p71, %p72
    %p74 = scmp.ne.s32.totalorder %s60, %s61
    %p75 = scmp.eq.s32.totalorder %s15, 1
    %p76 = por %p74, %p75
    %p78 = scmp.ne.s32.totalorder %s61, %s77
    %p79 = scmp.eq.s32.totalorder %s15, 0
    %p80 = por %p78, %p79
    %s81 = ssub.s32 %s17, %s24
    %p82 = scmp.eq.s32.totalorder %s81, 0
    %s84 = sadd.s32 %s83, 1
    %s85 = scalar_select %p82, %s83, %s84
    %p88 = pneg %p82
    %p89 = scmp.eq.s32.totalorder %s9, 1
    %p90 = por %p88, %p89
    %p91 = scmp.ne.s32.totalorder %s83, %s86
    %p92 = scmp.eq.s32.totalorder %s9, 0
    %p93 = por %p91, %p92
    %p94 = scmp.ne.s32.totalorder %s83, %s86
    %p95 = scmp.eq.s32.totalorder %s14, 1
    %p96 = por %p94, %p95
    %p97 = scmp.ne.s32.totalorder %s86, %s87
    %p98 = scmp.eq.s32.totalorder %s14, 0
    %p99 = por %p97, %p98
    %p100 = scmp.ne.s32.totalorder %s86, %s87
    %p101 = scmp.eq.s32.totalorder %s15, 1
    %p102 = por %p100, %p101
    %p104 = scmp.ne.s32.totalorder %s87, %s103
    %p105 = scmp.eq.s32.totalorder %s15, 0
    %p106 = por %p104, %p105
    %s107 = ssub.s32 %s16, %s28
    %s108 = ssub.s32 %s17, %s24
    %s109 = sor.u32 %s107, %s108
    %p110 = scmp.eq.s32.totalorder %s109, 0
    %s112 = sadd.s32 %s111, 1
    %s113 = scalar_select %p110, %s111, %s112
    %p116 = pneg %p110
    %p117 = scmp.eq.s32.totalorder %s9, 1
    %p118 = por %p116, %p117
    %p119 = scmp.ne.s32.totalorder %s111, %s114
    %p120 = scmp.eq.s32.totalorder %s9, 0
    %p121 = por %p119, %p120
    %p122 = scmp.ne.s32.totalorder %s111, %s114
    %p123 = scmp.eq.s32.totalorder %s14, 1
    %p124 = por %p122, %p123
    %p125 = scmp.ne.s32.totalorder %s114, %s115
    %p126 = scmp.eq.s32.totalorder %s14, 0
    %p127 = por %p125, %p126
    %p128 = scmp.ne.s32.totalorder %s114, %s115
    %p129 = scmp.eq.s32.totalorder %s15, 1
    %p130 = por %p128, %p129
    %p132 = scmp.ne.s32.totalorder %s115, %s131
    %p133 = scmp.eq.s32.totalorder %s15, 0
    %p134 = por %p132, %p133
    %p135 = scmp.le.s32.totalorder 1, %s9
    %p136 = scmp.lt.s32.totalorder %s9, 3
    %p137 = pnand %p135, %p136
    %p138 = pneg %p137
    // Predicated region
    $region9: #{conv_bn_layer.1} parent=5 // pred_check
      _
    $region10: #{conv_bn_layer.1} parent=5 // pred_check_branch
      %140 = sbr.rel (%p137) target = $region12
    $region11: #{conv_bn_layer.1} parent=5 // pred_region
      %s141 = ssub.s32 %s9, 1
      // Predicated region
      $region13: #{conv_bn_layer.1} parent=11 // pred_check
        %p142 = pneg %p73
      $region14: #{conv_bn_layer.1} parent=11 // pred_check_branch
        %144 = sbr.rel (%p142) target = $region16
      $region15: #{conv_bn_layer.1} parent=11 // pred_region
        %p145 = scmp.lt.s32.totalorder %s19, 0
        %s146 = scalar_select %p145, %s19, 0
        %s147 = smul.addr %s146, 4
        %s148 = scalar_lea.vmem %s1, %s147
      $region16: #{conv_bn_layer.1} parent=11 // pred_fallthru
        _
      // Predicated region
      $region17: #{conv_bn_layer.1} parent=11 // pred_check
        %p149 = pneg %p99
      $region18: #{conv_bn_layer.1} parent=11 // pred_check_branch
        %151 = sbr.rel (%p149) target = $region20
      $region19: #{conv_bn_layer.1} parent=11 // pred_region
        %p152 = scmp.lt.s32.totalorder %s19, 0
        %s153 = scalar_select %p152, %s19, 0
        %s154 = scalar_lea.vmem %s2, %s153
      $region20: #{conv_bn_layer.1} parent=11 // pred_fallthru
        _
    $region12: #{conv_bn_layer.1} parent=5 // pred_fallthru
      _
    %p155 = scmp.lt.s32.totalorder %s9, 2
    // Predicated region
    $region21: #{conv_bn_layer.1} parent=5 // pred_check
      %p156 = pneg %p155
    $region22: #{conv_bn_layer.1} parent=5 // pred_check_branch
      %158 = sbr.rel (%p156) target = $region24
    $region23: #{conv_bn_layer.1} parent=5 // pred_region
      // Predicated region
      $region25: #{conv_bn_layer.1} parent=23 // pred_check
        %p159 = pneg %p41
      $region26: #{conv_bn_layer.1} parent=23 // pred_check_branch
        %161 = sbr.rel (%p159) target = $region28
      $region27: #{conv_bn_layer.1} parent=23 // pred_region
        %s162 = smul.u32 32, %s16
        %p163 = scmp.lt.s32.totalorder %s162, 63
        %s164 = scalar_select %p163, %s162, 63
        %s165 = smul.addr %s164, 4
        %s166 = scalar_lea.vmem %s0, %s165
        %s167 = smul.u32 32, %s16
      $region28: #{conv_bn_layer.1} parent=23 // pred_fallthru
        _
    $region24: #{conv_bn_layer.1} parent=5 // pred_fallthru
      _
    %p168 = scmp.le.s32.totalorder 1, %s9
    %p169 = scmp.lt.s32.totalorder %s9, 3
    %p170 = pnand %p168, %p169
    %p171 = pneg %p170
    // Predicated region
    $region29: #{conv_bn_layer.1} parent=5 // pred_check
      _
    $region30: #{conv_bn_layer.1} parent=5 // pred_check_branch
      %173 = sbr.rel (%p170) target = $region32
    $region31: #{conv_bn_layer.1} parent=5 // pred_region
      %s174 = ssub.s32 %s9, 1
      %s175 = smul.u32 32, %s18
      %p176 = scmp.lt.s32.totalorder %s175, 63
      %s177 = scalar_select %p176, %s175, 63
      %s178 = smul.addr %s177, 4
      %s179 = scalar_lea.vmem %s0, %s178
      %p180 = pneg %p47
      %p181 = pneg %p44
      %p182 = scmp.lt.s32.totalorder %s19, 0
      %s183 = scalar_select %p182, %s19, 0
      %s184 = smul.addr %s183, 4
      %s185 = scalar_lea.vmem %s1, %s184
      %p186 = pneg %p73
      %p187 = pneg %p70
      %p188 = scmp.lt.s32.totalorder %s19, 0
      %s189 = scalar_select %p188, %s19, 0
      %s190 = scalar_lea.vmem %s2, %s189
      %p191 = pneg %p99
      %p192 = pneg %p96
      %p193 = pneg %p127
      %p194 = pneg %p124
      %s195 = smul.u32 32, %s18
      %p196 = scmp.lt.s32.totalorder %s195, 63
      %s197 = scalar_select %p196, %s195, 63
      %p198 = scmp.lt.s32.totalorder %s19, 0
      %s199 = scalar_select %p198, %s19, 0
      %s200 = sadd.s32 %s199, %s197
      %s201 = smul.addr %s200, 8
      %s202 = scalar_lea.vmem %s3, %s201
      %s203 = smul.u32 32, %s18
      %p204 = scmp.lt.s32.totalorder %s203, 63
      %s205 = scalar_select %p204, %s203, 63
      %s206 = smul.addr %s205, 4
      %s207 = scalar_lea.vmem %s0, %s206
      %s208 = smul.u32 32, %s18
      %p209 = scmp.lt.s32.totalorder %s19, 0
      %s210 = scalar_select %p209, %s19, 0
      %s211 = smul.addr %s210, 4
      %s212 = scalar_lea.vmem %s1, %s211
      %p213 = scmp.lt.s32.totalorder %s19, 0
      %s214 = scalar_select %p213, %s19, 0
      %s215 = scalar_lea.vmem %s2, %s214
      %s216 = smul.u32 32, %s18
      %p217 = scmp.lt.s32.totalorder %s216, 63
      %s218 = scalar_select %p217, %s216, 63
      %p219 = scmp.lt.s32.totalorder %s19, 0
      %s220 = scalar_select %p219, %s19, 0
      %s221 = sadd.s32 %s220, %s218
      %s222 = smul.addr %s221, 8
      %s223 = scalar_lea.vmem %s3, %s222
      %s224 = smul.u32 32, %s18
      %v225 = vld [vmem:[%s207] sm:$0xf]
      %v226 = vld [vmem:[%s207 + $0x4] sm:$0xf]
      %v227 = vld [vmem:[%s207 + $0x8] sm:$0xf]
      %v228 = vld [vmem:[%s207 + $0xc] sm:$0xf]
      %v229 = vld [vmem:[%s207 + $0x10] sm:$0xf]
      %v230 = vld [vmem:[%s207 + $0x14] sm:$0xf]
      %v231 = vld [vmem:[%s207 + $0x18] sm:$0xf]
      %v232 = vld [vmem:[%s207 + $0x1c] sm:$0xf]
      %v233 = vld [vmem:[%s207 + $0x20] sm:$0xf]
      %v234 = vld [vmem:[%s207 + $0x24] sm:$0xf]
      %v235 = vld [vmem:[%s207 + $0x28] sm:$0xf]
      %v236 = vld [vmem:[%s207 + $0x2c] sm:$0xf]
      %v237 = vld [vmem:[%s207 + $0x30] sm:$0xf]
      %v238 = vld [vmem:[%s207 + $0x34] sm:$0xf]
      %v239 = vld [vmem:[%s207 + $0x38] sm:$0xf]
      %v240 = vld [vmem:[%s207 + $0x3c] sm:$0xf]
      %v241 = vld [vmem:[%s207 + $0x40] sm:$0xf]
      %v242 = vld [vmem:[%s207 + $0x44] sm:$0xf]
      %v243 = vld [vmem:[%s207 + $0x48] sm:$0xf]
      %v244 = vld [vmem:[%s207 + $0x4c] sm:$0xf]
      %v245 = vld [vmem:[%s207 + $0x50] sm:$0xf]
      %v246 = vld [vmem:[%s207 + $0x54] sm:$0xf]
      %v247 = vld [vmem:[%s207 + $0x58] sm:$0xf]
      %v248 = vld [vmem:[%s207 + $0x5c] sm:$0xf]
      %v249 = vld [vmem:[%s207 + $0x60] sm:$0xf]
      %v250 = vld [vmem:[%s207 + $0x64] sm:$0xf]
      %v251 = vld [vmem:[%s207 + $0x68] sm:$0xf]
      %v252 = vld [vmem:[%s207 + $0x6c] sm:$0xf]
      %v253 = vld [vmem:[%s207 + $0x70] sm:$0xf]
      %v254 = vld [vmem:[%s207 + $0x74] sm:$0xf]
      %v255 = vld [vmem:[%s207 + $0x78] sm:$0xf]
      %v256 = vld [vmem:[%s207 + $0x7c] sm:$0xf]
      %v257 = vld [vmem:[%s212] sm:$0xf]
      %v258 = vld [vmem:[%s212 + $0x4] sm:$0xf]
      %v259 = vld [vmem:[%s212 + $0x8] sm:$0xf]
      %v260 = vld [vmem:[%s212 + $0xc] sm:$0xf]
      %v261 = vld [vmem:[%s212 + $0x10] sm:$0xf]
      %v262 = vld [vmem:[%s212 + $0x14] sm:$0xf]
      %v263 = vld [vmem:[%s212 + $0x18] sm:$0xf]
      %v264 = vld [vmem:[%s212 + $0x1c] sm:$0xf]
      %v265 = vld [vmem:[%s212 + $0x20] sm:$0xf]
      %v266 = vld [vmem:[%s212 + $0x24] sm:$0xf]
      %v267 = vld [vmem:[%s212 + $0x28] sm:$0xf]
      %v268 = vld [vmem:[%s212 + $0x2c] sm:$0xf]
      %v269 = vld [vmem:[%s212 + $0x30] sm:$0xf]
      %v270 = vld [vmem:[%s212 + $0x34] sm:$0xf]
      %v271 = vld [vmem:[%s212 + $0x38] sm:$0xf]
      %v272 = vld [vmem:[%s212 + $0x3c] sm:$0xf]
      %v273 = vld [vmem:[%s215] sm:$0x1]
      %v275 = vperm.slane %v273, 0
      %v309 = vunpack.c.l.b16 %v225
      %v310 = vunpack.c.l.b16 %v226
      %v311 = vunpack.c.l.b16 %v227
      %v312 = vunpack.c.l.b16 %v228
      %v313 = vunpack.c.l.b16 %v229
      %v314 = vunpack.c.l.b16 %v230
      %v315 = vunpack.c.l.b16 %v231
      %v316 = vunpack.c.l.b16 %v232
      %v317 = vunpack.c.l.b16 %v233
      %v318 = vunpack.c.l.b16 %v234
      %v319 = vunpack.c.l.b16 %v235
      %v320 = vunpack.c.l.b16 %v236
      %v321 = vunpack.c.l.b16 %v237
      %v322 = vunpack.c.l.b16 %v238
      %v323 = vunpack.c.l.b16 %v239
      %v324 = vunpack.c.l.b16 %v240
      %v325 = vunpack.c.l.b16 %v241
      %v326 = vunpack.c.l.b16 %v242
      %v327 = vunpack.c.l.b16 %v243
      %v328 = vunpack.c.l.b16 %v244
      %v329 = vunpack.c.l.b16 %v245
      %v330 = vunpack.c.l.b16 %v246
      %v331 = vunpack.c.l.b16 %v247
      %v332 = vunpack.c.l.b16 %v248
      %v333 = vunpack.c.l.b16 %v249
      %v334 = vunpack.c.l.b16 %v250
      %v335 = vunpack.c.l.b16 %v251
      %v336 = vunpack.c.l.b16 %v252
      %v337 = vunpack.c.l.b16 %v253
      %v338 = vunpack.c.l.b16 %v254
      %v339 = vunpack.c.l.b16 %v255
      %v340 = vunpack.c.l.b16 %v256
      %v341 = vpack.c.b16 %v310, %v309
      %v342 = vpack.c.b16 %v312, %v311
      %v343 = vpack.c.b16 %v314, %v313
      %v344 = vpack.c.b16 %v316, %v315
      %v345 = vpack.c.b16 %v318, %v317
      %v346 = vpack.c.b16 %v320, %v319
      %v347 = vpack.c.b16 %v322, %v321
      %v348 = vpack.c.b16 %v324, %v323
      %v349 = vpack.c.b16 %v326, %v325
      %v350 = vpack.c.b16 %v328, %v327
      %v351 = vpack.c.b16 %v330, %v329
      %v352 = vpack.c.b16 %v332, %v331
      %v353 = vpack.c.b16 %v334, %v333
      %v354 = vpack.c.b16 %v336, %v335
      %v355 = vpack.c.b16 %v338, %v337
      %v356 = vpack.c.b16 %v340, %v339
      %v389 = vunpack.c.l.b16 %v257
      %v390 = vunpack.c.l.b16 %v258
      %v391 = vunpack.c.l.b16 %v259
      %v392 = vunpack.c.l.b16 %v260
      %v393 = vunpack.c.l.b16 %v261
      %v394 = vunpack.c.l.b16 %v262
      %v395 = vunpack.c.l.b16 %v263
      %v396 = vunpack.c.l.b16 %v264
      %v397 = vunpack.c.l.b16 %v265
      %v398 = vunpack.c.l.b16 %v266
      %v399 = vunpack.c.l.b16 %v267
      %v400 = vunpack.c.l.b16 %v268
      %v401 = vunpack.c.l.b16 %v269
      %v402 = vunpack.c.l.b16 %v270
      %v403 = vunpack.c.l.b16 %v271
      %v404 = vunpack.c.l.b16 %v272
      %v405 = vpack.c.b16 %v390, %v389
      %v406 = vpack.c.b16 %v392, %v391
      %v407 = vpack.c.b16 %v394, %v393
      %v408 = vpack.c.b16 %v396, %v395
      %v409 = vpack.c.b16 %v398, %v397
      %v410 = vpack.c.b16 %v400, %v399
      %v411 = vpack.c.b16 %v402, %v401
      %v412 = vpack.c.b16 %v404, %v403
      %421 = vmatpush.bf16.msra.mxu0 %v412
      %422 = vmatpush.bf16.msra.mxu0 %v411
      %423 = vmatpush.bf16.msra.mxu0 %v410
      %424 = vmatpush.bf16.msra.mxu0 %v409
      %425 = vmatpush.bf16.msra.mxu0 %v408
      %426 = vmatpush.bf16.msra.mxu0 %v407
      %427 = vmatpush.bf16.msra.mxu0 %v406
      %428 = vmatpush.bf16.msra.mxu0 %v405
      %429 = vmatmul.bf16.gmra.mxu0 %v341
      %v430 = vpop.f32.mrf.mxu0
      %v431 = vadd.f32 %v275, %v430
      %v432 = vpop.f32.mrf.mxu0
      %v433 = vadd.f32 %v275, %v432
      %434 = vmatmul.bf16.gmra.mxu0 %v342
      %v435 = vpop.f32.mrf.mxu0
      %v436 = vadd.f32 %v275, %v435
      %v437 = vpop.f32.mrf.mxu0
      %v438 = vadd.f32 %v275, %v437
      %439 = vmatmul.bf16.gmra.mxu0 %v343
      %v440 = vpop.f32.mrf.mxu0
      %v441 = vadd.f32 %v275, %v440
      %v442 = vpop.f32.mrf.mxu0
      %v443 = vadd.f32 %v275, %v442
      %444 = vmatmul.bf16.gmra.mxu0 %v344
      %v445 = vpop.f32.mrf.mxu0
      %v446 = vadd.f32 %v275, %v445
      %v447 = vpop.f32.mrf.mxu0
      %v448 = vadd.f32 %v275, %v447
      %449 = vmatmul.bf16.gmra.mxu0 %v345
      %v450 = vpop.f32.mrf.mxu0
      %v451 = vadd.f32 %v275, %v450
      %v452 = vpop.f32.mrf.mxu0
      %v453 = vadd.f32 %v275, %v452
      %454 = vmatmul.bf16.gmra.mxu0 %v346
      %v455 = vpop.f32.mrf.mxu0
      %v456 = vadd.f32 %v275, %v455
      %v457 = vpop.f32.mrf.mxu0
      %v458 = vadd.f32 %v275, %v457
      %459 = vmatmul.bf16.gmra.mxu0 %v347
      %v460 = vpop.f32.mrf.mxu0
      %v461 = vadd.f32 %v275, %v460
      %v462 = vpop.f32.mrf.mxu0
      %v463 = vadd.f32 %v275, %v462
      %464 = vmatmul.bf16.gmra.mxu0 %v348
      %v465 = vpop.f32.mrf.mxu0
      %v466 = vadd.f32 %v275, %v465
      %v467 = vpop.f32.mrf.mxu0
      %v468 = vadd.f32 %v275, %v467
      %469 = vmatmul.bf16.gmra.mxu0 %v349
      %v470 = vpop.f32.mrf.mxu0
      %v471 = vadd.f32 %v275, %v470
      %v472 = vpop.f32.mrf.mxu0
      %v473 = vadd.f32 %v275, %v472
      %474 = vmatmul.bf16.gmra.mxu0 %v350
      %v475 = vpop.f32.mrf.mxu0
      %v476 = vadd.f32 %v275, %v475
      %v477 = vpop.f32.mrf.mxu0
      %v478 = vadd.f32 %v275, %v477
      %479 = vmatmul.bf16.gmra.mxu0 %v351
      %v480 = vpop.f32.mrf.mxu0
      %v481 = vadd.f32 %v275, %v480
      %v482 = vpop.f32.mrf.mxu0
      %v483 = vadd.f32 %v275, %v482
      %484 = vmatmul.bf16.gmra.mxu0 %v352
      %v485 = vpop.f32.mrf.mxu0
      %v486 = vadd.f32 %v275, %v485
      %v487 = vpop.f32.mrf.mxu0
      %v488 = vadd.f32 %v275, %v487
      %489 = vmatmul.bf16.gmra.mxu0 %v353
      %v490 = vpop.f32.mrf.mxu0
      %v491 = vadd.f32 %v275, %v490
      %v492 = vpop.f32.mrf.mxu0
      %v493 = vadd.f32 %v275, %v492
      %494 = vmatmul.bf16.gmra.mxu0 %v354
      %v495 = vpop.f32.mrf.mxu0
      %v496 = vadd.f32 %v275, %v495
      %v497 = vpop.f32.mrf.mxu0
      %v498 = vadd.f32 %v275, %v497
      %499 = vmatmul.bf16.gmra.mxu0 %v355
      %v500 = vpop.f32.mrf.mxu0
      %v501 = vadd.f32 %v275, %v500
      %v502 = vpop.f32.mrf.mxu0
      %v503 = vadd.f32 %v275, %v502
      %504 = vmatmul.bf16.gmra.mxu0 %v356
      %v505 = vpop.f32.mrf.mxu0
      %v506 = vadd.f32 %v275, %v505
      %v507 = vpop.f32.mrf.mxu0
      %v508 = vadd.f32 %v275, %v507
      %509 = vdwg.mxu0
      %v510 = vmax.f32 %v431, 0.0
      %v511 = vmax.f32 %v433, 0.0
      %v512 = vmax.f32 %v436, 0.0
      %v513 = vmax.f32 %v438, 0.0
      %v514 = vmax.f32 %v441, 0.0
      %v515 = vmax.f32 %v443, 0.0
      %v516 = vmax.f32 %v446, 0.0
      %v517 = vmax.f32 %v448, 0.0
      %v518 = vmax.f32 %v451, 0.0
      %v519 = vmax.f32 %v453, 0.0
      %v520 = vmax.f32 %v456, 0.0
      %v521 = vmax.f32 %v458, 0.0
      %v522 = vmax.f32 %v461, 0.0
      %v523 = vmax.f32 %v463, 0.0
      %v524 = vmax.f32 %v466, 0.0
      %v525 = vmax.f32 %v468, 0.0
      %v526 = vmax.f32 %v471, 0.0
      %v527 = vmax.f32 %v473, 0.0
      %v528 = vmax.f32 %v476, 0.0
      %v529 = vmax.f32 %v478, 0.0
      %v530 = vmax.f32 %v481, 0.0
      %v531 = vmax.f32 %v483, 0.0
      %v532 = vmax.f32 %v486, 0.0
      %v533 = vmax.f32 %v488, 0.0
      %v534 = vmax.f32 %v491, 0.0
      %v535 = vmax.f32 %v493, 0.0
      %v536 = vmax.f32 %v496, 0.0
      %v537 = vmax.f32 %v498, 0.0
      %v538 = vmax.f32 %v501, 0.0
      %v539 = vmax.f32 %v503, 0.0
      %v540 = vmax.f32 %v506, 0.0
      %v541 = vmax.f32 %v508, 0.0
      %542 = vst [vmem:[%s223] sm:$0xff] %v510
      %543 = vst [vmem:[%s223 + $0x8] sm:$0xff] %v511
      %544 = vst [vmem:[%s223 + $0x10] sm:$0xff] %v512
      %545 = vst [vmem:[%s223 + $0x18] sm:$0xff] %v513
      %546 = vst [vmem:[%s223 + $0x20] sm:$0xff] %v514
      %547 = vst [vmem:[%s223 + $0x28] sm:$0xff] %v515
      %548 = vst [vmem:[%s223 + $0x30] sm:$0xff] %v516
      %549 = vst [vmem:[%s223 + $0x38] sm:$0xff] %v517
      %550 = vst [vmem:[%s223 + $0x40] sm:$0xff] %v518
      %551 = vst [vmem:[%s223 + $0x48] sm:$0xff] %v519
      %552 = vst [vmem:[%s223 + $0x50] sm:$0xff] %v520
      %553 = vst [vmem:[%s223 + $0x58] sm:$0xff] %v521
      %554 = vst [vmem:[%s223 + $0x60] sm:$0xff] %v522
      %555 = vst [vmem:[%s223 + $0x68] sm:$0xff] %v523
      %556 = vst [vmem:[%s223 + $0x70] sm:$0xff] %v524
      %557 = vst [vmem:[%s223 + $0x78] sm:$0xff] %v525
      %558 = vst [vmem:[%s223 + $0x80] sm:$0xff] %v526
      %559 = vst [vmem:[%s223 + $0x88] sm:$0xff] %v527
      %560 = vst [vmem:[%s223 + $0x90] sm:$0xff] %v528
      %561 = vst [vmem:[%s223 + $0x98] sm:$0xff] %v529
      %562 = vst [vmem:[%s223 + $0xa0] sm:$0xff] %v530
      %563 = vst [vmem:[%s223 + $0xa8] sm:$0xff] %v531
      %564 = vst [vmem:[%s223 + $0xb0] sm:$0xff] %v532
      %565 = vst [vmem:[%s223 + $0xb8] sm:$0xff] %v533
      %566 = vst [vmem:[%s223 + $0xc0] sm:$0xff] %v534
      %567 = vst [vmem:[%s223 + $0xc8] sm:$0xff] %v535
      %568 = vst [vmem:[%s223 + $0xd0] sm:$0xff] %v536
      %569 = vst [vmem:[%s223 + $0xd8] sm:$0xff] %v537
      %570 = vst [vmem:[%s223 + $0xe0] sm:$0xff] %v538
      %571 = vst [vmem:[%s223 + $0xe8] sm:$0xff] %v539
      %572 = vst [vmem:[%s223 + $0xf0] sm:$0xff] %v540
      %573 = vst [vmem:[%s223 + $0xf8] sm:$0xff] %v541
      %s574 = smul.u32 32, %s18
      %p575 = scmp.lt.s32.totalorder %s574, 63
      %s576 = scalar_select %p575, %s574, 63
      %p577 = scmp.lt.s32.totalorder %s19, 0
      %s578 = scalar_select %p577, %s19, 0
      %s579 = sadd.s32 %s578, %s576
      %s580 = smul.addr %s579, 8
      %s581 = scalar_lea.vmem %s3, %s580
      // Predicated region
      $region33: #{conv_bn_layer.1} parent=31 // pred_check
        %p582 = pneg %p124
      $region34: #{conv_bn_layer.1} parent=31 // pred_check_branch
        %584 = sbr.rel (%p582) target = $region36
      $region35: #{conv_bn_layer.1} parent=31 // pred_region
        %s585 = smul.u32 32, %s18
      $region36: #{conv_bn_layer.1} parent=31 // pred_fallthru
        _
    $region32: #{conv_bn_layer.1} parent=5 // pred_fallthru
      _
    %p586 = scmp.le.s32.totalorder 2, %s9
    // Predicated region
    $region37: #{conv_bn_layer.1} parent=5 // pred_check
      %p587 = pneg %p586
    $region38: #{conv_bn_layer.1} parent=5 // pred_check_branch
      %589 = sbr.rel (%p587) target = $region40
    $region39: #{conv_bn_layer.1} parent=5 // pred_region
      %s590 = ssub.s32 %s9, 2
      // Predicated region
      $region41: #{conv_bn_layer.1} parent=39 // pred_check
        %p591 = pneg %p130
      $region42: #{conv_bn_layer.1} parent=39 // pred_check_branch
        %593 = sbr.rel (%p591) target = $region44
      $region43: #{conv_bn_layer.1} parent=39 // pred_region
        %s594 = smul.u32 32, %s20
        %p595 = scmp.lt.s32.totalorder %s594, 63
        %s596 = scalar_select %p595, %s594, 63
        %p597 = scmp.lt.s32.totalorder %s21, 0
        %s598 = scalar_select %p597, %s21, 0
        %s599 = sadd.s32 %s598, %s596
        %s600 = smul.addr %s599, 8
        %s601 = scalar_lea.vmem %s3, %s600
      $region44: #{conv_bn_layer.1} parent=39 // pred_fallthru
        _
    $region40: #{conv_bn_layer.1} parent=5 // pred_fallthru
      _
  $region6: #{conv_bn_layer.1} parent=0 // loop_footer
    %s13 = sadd.s32 1, %s9
  $region7: #{conv_bn_layer.1} parent=0 // loop_footer_branch
    %8 = sbr.rel target = $region3
  $region8: #{conv_bn_layer.1} parent=0 // loop_exit
    _

</llo_original>
